<compile_context>
chip_gen: v7x
topology: tpu7x:2x2x1
jax: 0.10.0
libtpu: 0.0.40
codegen_flags: <defaults>
</compile_context>

<pallas_src>
import functools

import jax
import jax.numpy as jnp
from jax.experimental import pallas as pl
from jax.experimental.pallas import tpu as pltpu

LANE = 128                      # lane width / feature padding target
SUBLANE = 8                     # sublane width / batch padding granularity
MAX_BATCH_TILE = 512            # per review: >=256 rows fills the v6e/v7x MXU
_PARALLEL_CHUNK_THRESHOLD = 256  # above this batch size, use 2 chunks (v7x 2 TCs)
_VMEM_SOFT_LIMIT = 48 * 2**20   # stay well inside v7x's 64 MiB physical VMEM


def _round_up(x, m):
    return ((x + m - 1) // m) * m


# ----------------------------------------------------------------------------- #
# Kernel: whole decoder, one grid point per (chunk, batch tile).
# ----------------------------------------------------------------------------- #
def _decoder_fused_kernel(x_ref, w0_ref, b0_ref, wstk_hbm_ref, bstk_ref, o_ref,
                          w_vmem, copy_sem, *, n_stacked):
    # x_ref   : [BT, latent]        activations for this batch tile (no lane pad)
    # w0_ref  : [latent, F]         input-block weight (BN folded forward)
    # b0_ref  : [1, F]              input-block bias
    # wstk_hbm: [L-1, F, F] (HBM)   stacked hidden+output weights, BN-folded
    # bstk_ref: [L-1, 1, F]         stacked biases
    # w_vmem  : [L-1, F, F] (VMEM)  single-buffered resident copy of the weights

    # One-time weight load per core: program_id(1) is the "arbitrary" axis, so
    # every core sees i == 0 before any other i of its chunk (megacore-safe).
    @pl.when(pl.program_id(1) == 0)
    def _load_weights():
        cp = pltpu.make_async_copy(wstk_hbm_ref, w_vmem, copy_sem.at[0])
        cp.start()
        cp.wait()

    w_dtype = w_vmem.dtype

    # Input block: Linear(latent, hidden) -> ReLU.  Dropout is identity in eval;
    # the trailing BatchNorm affine has been folded into the next layer.
    h = jnp.dot(x_ref[...].astype(w_dtype), w0_ref[...],
                preferred_element_type=jnp.float32)
    h = jnp.maximum(h + b0_ref[...], 0.0)

    # Hidden blocks + output block: uniform relu(h @ W + b) after folding.
    # Static Python loop -> fully unrolled chain of MXU matmuls.
    for l in range(n_stacked):
        h = jnp.dot(h.astype(w_dtype), w_vmem[l],
                    preferred_element_type=jnp.float32)
        h = jnp.maximum(h + bstk_ref[l], 0.0)

    o_ref[...] = h.astype(o_ref.dtype)


def decoder_pallas(x_pad, w0, b0, w_stack, b_stack, *, batch_tile,
                   tiles_per_chunk, n_chunks, vmem_limit_bytes, cost_estimate):
    Bp, latent = x_pad.shape
    n_stacked, F, _ = w_stack.shape
    kernel = functools.partial(_decoder_fused_kernel, n_stacked=n_stacked)

    def tile_map(c, i):
        return (c * tiles_per_chunk + i, 0)

    return pl.pallas_call(
        kernel,
        out_shape=jax.ShapeDtypeStruct((Bp, F), jnp.float32),
        grid=(n_chunks, tiles_per_chunk),
        in_specs=[
            pl.BlockSpec((batch_tile, latent), tile_map),            # activations
            pl.BlockSpec((latent, F), lambda c, i: (0, 0)),          # input-block W (small)
            pl.BlockSpec((1, F), lambda c, i: (0, 0)),               # input-block b
            pl.BlockSpec(memory_space=pl.ANY),                       # stacked W: raw HBM
            pl.BlockSpec((n_stacked, 1, F), lambda c, i: (0, 0, 0)),  # stacked b (tiny)
        ],
        out_specs=pl.BlockSpec((batch_tile, F), tile_map),           # lane-dense output
        scratch_shapes=[
            pltpu.VMEM((n_stacked, F, F), w_stack.dtype),  # single-buffered weights
            pltpu.SemaphoreType.DMA((1,)),
        ],
        compiler_params=pltpu.CompilerParams(
            dimension_semantics=("parallel", "arbitrary"),  # chunk axis -> v7x 2 TCs
            vmem_limit_bytes=vmem_limit_bytes,
        ),
        cost_estimate=cost_estimate,
    )(x_pad, w0, b0, w_stack, b_stack)


# ----------------------------------------------------------------------------- #
# Parameters: PyTorch-equivalent init, then BN folding + lane padding.
# ----------------------------------------------------------------------------- #
def init_decoder_params(key, latent_dim, hidden_dim, output_dim, n_layers):
    """Synthetic parameters matching the module's __init__ shapes (eval mode)."""
    eps = 1e-5
    dims = ([(latent_dim, hidden_dim)]
            + [(hidden_dim, hidden_dim)] * n_layers
            + [(hidden_dim, output_dim)])
    keys = jax.random.split(key, 2 * len(dims))
    layers = []
    for i, (fin, fout) in enumerate(dims):
        kw, kb = keys[2 * i], keys[2 * i + 1]
        bound = 1.0 / jnp.sqrt(fin)
        w = jax.random.uniform(kw, (fin, fout), jnp.float32, -bound, bound)
        b = jax.random.uniform(kb, (fout,), jnp.float32, -bound, bound)
        has_bn = i < len(dims) - 1  # output_block has no BatchNorm
        if has_bn:
            gamma = jnp.ones((fout,), jnp.float32)
            beta = jnp.zeros((fout,), jnp.float32)
            running_mean = jnp.zeros((fout,), jnp.float32)
            running_var = jnp.ones((fout,), jnp.float32)
            scale = gamma / jnp.sqrt(running_var + eps)
            shift = beta - running_mean * scale
        else:
            scale, shift = None, None
        layers.append(dict(w=w, b=b, scale=scale, shift=shift))
    return dict(layers=layers)


def fold_and_pad_params(params, weight_dtype=jnp.float32):
    """Fold each layer's post-ReLU eval-BN affine into the NEXT layer's linear
    (exact), keep the input block at K=latent, and zero-pad / stack the rest to
    uniform [F, F] tiles where F = round_up(max feature dim, 128)."""
    layers = params["layers"]
    folded = []
    prev_scale = prev_shift = None
    for layer in layers:
        w, b = layer["w"], layer["b"]
        if prev_scale is not None:
            # input to this layer is h*scale + shift -> fold into W, b (exact)
            b = prev_shift @ w + b
            w = prev_scale[:, None] * w
        prev_scale, prev_shift = layer["scale"], layer["shift"]
        folded.append((w, b))
    # Final layer has no trailing BN, so nothing is left un-folded.

    F = _round_up(max(w.shape[1] for w, _ in folded), LANE)
    latent = folded[0][0].shape[0]

    # Input block kept at K=latent (avoids host-side lane padding of x).
    w0, b0 = folded[0]
    w0_p = jnp.zeros((latent, F), jnp.float32).at[:, : w0.shape[1]].set(w0)
    b0_p = jnp.zeros((1, F), jnp.float32).at[0, : b0.shape[0]].set(b0)

    w_list, b_list = [], []
    for w, b in folded[1:]:
        fin, fout = w.shape
        w_list.append(jnp.zeros((F, F), jnp.float32).at[:fin, :fout].set(w))
        b_list.append(jnp.zeros((1, F), jnp.float32).at[0, :fout].set(b))
    w_stack = jnp.stack(w_list)
    b_stack = jnp.stack(b_list)

    # Optional bf16 weights: MXU-native full rate on v6e/v7x and half the weight
    # VMEM/HBM footprint; biases + accumulation stay f32; zero padding is exact.
    w0_p = w0_p.astype(weight_dtype)
    w_stack = w_stack.astype(weight_dtype)
    return w0_p, b0_p, w_stack, b_stack


# ----------------------------------------------------------------------------- #
# Forward wrapper.
# ----------------------------------------------------------------------------- #
def _choose_tiling(B):
    """(batch_tile, tiles_per_chunk, n_chunks).  Big M tiles amortize per-step
    overhead and fill the 256-row MXU (v6e/v7x); >=2 chunks for large batches so
    the "parallel" axis actually splits across v7x's 2 TensorCores."""
    n_chunks = 2 if B > _PARALLEL_CHUNK_THRESHOLD else 1
    n_tiles = max(n_chunks, pl.cdiv(B, MAX_BATCH_TILE))
    n_tiles = _round_up(n_tiles, n_chunks)
    batch_tile = _round_up(pl.cdiv(B, n_tiles), SUBLANE)
    return batch_tile, n_tiles // n_chunks, n_chunks


@functools.partial(jax.jit, static_argnames=("output_dim",))
def decoder_forward(x, w0, b0, w_stack, b_stack, *, output_dim):
    # Eval-mode semantics: Dropout = identity, BatchNorm uses running stats
    # (folded into the next linear at parameter-prep time).
    # TODO(synk): train-mode dropout / BatchNorm batch-stat updates not implemented.
    B, latent = x.shape
    n_stacked, F, _ = w_stack.shape
    batch_tile, tiles_per_chunk, n_chunks = _choose_tiling(B)
    Bp = n_chunks * tiles_per_chunk * batch_tile

    x = x.astype(jnp.float32)
    x_pad = x if Bp == B else jnp.zeros((Bp, latent), jnp.float32).at[:B].set(x)

    # Explicit VMEM budget: single-buffered weight stack + double-buffered
    # activation tiles + small operands.  Must fit v7x's 64 MiB with headroom.
    w_itemsize = jnp.dtype(w_stack.dtype).itemsize
    w_bytes = n_stacked * F * F * w_itemsize
    small_bytes = 2 * (latent * F * w_itemsize + (n_stacked + 1) * F * 4)
    act_bytes = 2 * batch_tile * (latent + F) * 4
    vmem_needed = w_bytes + small_bytes + act_bytes + (2 << 20)
    if vmem_needed > _VMEM_SOFT_LIMIT:
        # TODO(synk): stream weights per layer (layer grid axis marked "arbitrary",
        # activation carried in VMEM scratch) once the stack exceeds VMEM.
        raise NotImplementedError(
            f"weight stack needs ~{vmem_needed >> 20} MiB VMEM; add per-layer streaming")
    vmem_limit = int(min(56 * 2**20, max(2 * vmem_needed, 32 * 2**20)))

    flops = 2 * Bp * (latent * F + n_stacked * F * F)
    bytes_accessed = int(x_pad.size * 4 + Bp * F * 4 + w_bytes
                         + latent * F * w_itemsize
                         + (F + n_stacked * F) * 4)
    cost = pl.CostEstimate(flops=flops, transcendentals=0,
                           bytes_accessed=bytes_accessed)

    out_pad = decoder_pallas(
        x_pad, w0, b0, w_stack, b_stack,
        batch_tile=batch_tile, tiles_per_chunk=tiles_per_chunk, n_chunks=n_chunks,
        vmem_limit_bytes=vmem_limit, cost_estimate=cost)
    return out_pad[:B, :output_dim]


def _reference_forward(x, params):
    """Pure-JAX reference with explicit (un-folded) eval-mode BatchNorm."""
    h = x
    for layer in params["layers"]:
        y = jnp.maximum(h @ layer["w"] + layer["b"], 0.0)
        if layer["scale"] is not None:
            y = y * layer["scale"] + layer["shift"]
        h = y
    return h


if __name__ == "__main__":
    latent_dim, hidden_dim, output_dim, n_layers = 16, 32, 64, 2
    batch = 8

    key = jax.random.PRNGKey(0)
    kx, kp = jax.random.split(key)
    x = jax.random.normal(kx, (batch, latent_dim), jnp.float32)
    params = init_decoder_params(kp, latent_dim, hidden_dim, output_dim, n_layers)
    ref = _reference_forward(x, params)

    # f32 weights: tight check against the f32 reference.
    w0, b0, w_stack, b_stack = fold_and_pad_params(params, weight_dtype=jnp.float32)
    out = decoder_forward(x, w0, b0, w_stack, b_stack, output_dim=output_dim)
    out = jax.block_until_ready(out)
    assert out.shape == (batch, output_dim)
    err = float(jnp.max(jnp.abs(out - ref)))
    assert jnp.allclose(out, ref, atol=1e-5, rtol=1e-5), err

    # bf16 weights (v6e/v7x MXU-native, half the weight VMEM/HBM traffic),
    # f32 accumulation: checked with a bf16-appropriate tolerance.
    w0h, b0h, w_stackh, b_stackh = fold_and_pad_params(params, weight_dtype=jnp.bfloat16)
    outh = decoder_forward(x, w0h, b0h, w_stackh, b_stackh, output_dim=output_dim)
    outh = jax.block_until_ready(outh)
    errh = float(jnp.max(jnp.abs(outh - ref)))
    assert jnp.allclose(outh, ref, atol=5e-2, rtol=5e-2), errh

    print("KERNEL_OK")
</pallas_src>

<mosaic_0001>
module attributes {stable_mosaic.version = 11 : i64} {
  func.func @_decoder_fused_kernel(%arg0: i32, %arg1: i32, %arg2: memref<8x16xf32, #tpu.memory_space<vmem>>, %arg3: memref<16x128xf32, #tpu.memory_space<vmem>>, %arg4: memref<1x128xf32, #tpu.memory_space<vmem>>, %arg5: memref<3x128x128xf32, #tpu.memory_space<any>>, %arg6: memref<3x1x128xf32, #tpu.memory_space<vmem>>, %arg7: memref<8x128xf32, #tpu.memory_space<vmem>>, %arg8: memref<3x128x128xf32, #tpu.memory_space<vmem>>, %arg9: memref<1x!tpu.dma_semaphore, #tpu.memory_space<semaphore_mem>>) attributes {dimension_semantics = [#tpu.dimension_semantics<parallel>, #tpu.dimension_semantics<arbitrary>], iteration_bounds = array<i64: 1, 1>, scalar_prefetch = 0 : i64, scratch_operands = 2 : i64, tpu.core_type = #tpu.core_type<tc>, window_params = [{transform_indices = @transform_0, window_bounds = array<i64: 8, 16>}, {pipeline_mode = #tpu.pipeline_mode<synchronous>, transform_indices = @transform_1, window_bounds = array<i64: 16, 128>}, {pipeline_mode = #tpu.pipeline_mode<synchronous>, transform_indices = @transform_2, window_bounds = array<i64: 1, 128>}, {}, {pipeline_mode = #tpu.pipeline_mode<synchronous>, transform_indices = @transform_4, window_bounds = array<i64: 3, 1, 128>}, {transform_indices = @transform_5, window_bounds = array<i64: 8, 128>}]} {
    %c0_i32 = arith.constant 0 : i32
    %0 = arith.cmpi eq, %arg1, %c0_i32 : i32
    %1 = arith.extui %0 : i1 to i32
    %c0_i32_0 = arith.constant 0 : i32
    %2 = arith.cmpi ne, %1, %c0_i32_0 : i32
    scf.if %2 {
      %c0_i32_31 = arith.constant 0 : i32
      %39 = tpu.memref_slice %arg9[%c0_i32_31] : memref<1x!tpu.dma_semaphore, #tpu.memory_space<semaphore_mem>> -> memref<1x!tpu.dma_semaphore, #tpu.memory_space<semaphore_mem>>
      %40 = tpu.memref_squeeze %39 : memref<1x!tpu.dma_semaphore, #tpu.memory_space<semaphore_mem>> -> memref<!tpu.dma_semaphore, #tpu.memory_space<semaphore_mem>>
      tpu.enqueue_dma source(%arg5 : memref<3x128x128xf32, #tpu.memory_space<any>>) target(%arg8 : memref<3x128x128xf32, #tpu.memory_space<vmem>>) target_semaphore(%40 : memref<!tpu.dma_semaphore, #tpu.memory_space<semaphore_mem>>)
      %c0_i32_32 = arith.constant 0 : i32
      %41 = tpu.memref_slice %arg9[%c0_i32_32] : memref<1x!tpu.dma_semaphore, #tpu.memory_space<semaphore_mem>> -> memref<1x!tpu.dma_semaphore, #tpu.memory_space<semaphore_mem>>
      %42 = tpu.memref_squeeze %41 : memref<1x!tpu.dma_semaphore, #tpu.memory_space<semaphore_mem>> -> memref<!tpu.dma_semaphore, #tpu.memory_space<semaphore_mem>>
      tpu.wait_dma2 semaphore(%42 : memref<!tpu.dma_semaphore, #tpu.memory_space<semaphore_mem>>) src(%arg5 : memref<3x128x128xf32, #tpu.memory_space<any>>) dst(%arg8 : memref<3x128x128xf32, #tpu.memory_space<vmem>>)
    } else {
    }
    %c0 = arith.constant 0 : index
    %c0_1 = arith.constant 0 : index
    %3 = vector.load %arg2[%c0, %c0_1] : memref<8x16xf32, #tpu.memory_space<vmem>>, vector<8x16xf32>
    %c0_2 = arith.constant 0 : index
    %c0_3 = arith.constant 0 : index
    %4 = vector.load %arg3[%c0_2, %c0_3] : memref<16x128xf32, #tpu.memory_space<vmem>>, vector<16x128xf32>
    %cst = arith.constant dense<0.000000e+00> : vector<8x128xf32>
    %5 = tpu.matmul %3, %4, %cst {dimension_numbers = #tpu.dot_dimension_numbers<[1], [0], [0], [1], [0, 0, 1, 1], [], []>} : vector<8x16xf32>, vector<16x128xf32>, vector<8x128xf32> -> vector<8x128xf32>
    %c0_4 = arith.constant 0 : index
    %c0_5 = arith.constant 0 : index
    %6 = vector.load %arg4[%c0_4, %c0_5] : memref<1x128xf32, #tpu.memory_space<vmem>>, vector<1x128xf32>
    %7 = vector.broadcast %6 : vector<1x128xf32> to vector<8x128xf32>
    %8 = arith.addf %5, %7 : vector<8x128xf32>
    %cst_6 = arith.constant 0.000000e+00 : f32
    %9 = vector.broadcast %cst_6 : f32 to vector<8x128xf32>
    %10 = arith.maximumf %8, %9 : vector<8x128xf32>
    %c0_7 = arith.constant 0 : index
    %c0_8 = arith.constant 0 : index
    %c0_9 = arith.constant 0 : index
    %11 = vector.load %arg8[%c0_7, %c0_8, %c0_9] : memref<3x128x128xf32, #tpu.memory_space<vmem>>, vector<1x128x128xf32>
    %12 = vector.shape_cast %11 : vector<1x128x128xf32> to vector<128x128xf32>
    %cst_10 = arith.constant dense<0.000000e+00> : vector<8x128xf32>
    %13 = tpu.matmul %10, %12, %cst_10 {dimension_numbers = #tpu.dot_dimension_numbers<[1], [0], [0], [1], [0, 0, 1, 1], [], []>} : vector<8x128xf32>, vector<128x128xf32>, vector<8x128xf32> -> vector<8x128xf32>
    %c0_11 = arith.constant 0 : index
    %c0_12 = arith.constant 0 : index
    %c0_13 = arith.constant 0 : index
    %14 = vector.load %arg6[%c0_11, %c0_12, %c0_13] : memref<3x1x128xf32, #tpu.memory_space<vmem>>, vector<1x1x128xf32>
    %15 = vector.shape_cast %14 : vector<1x1x128xf32> to vector<1x128xf32>
    %16 = vector.broadcast %15 : vector<1x128xf32> to vector<8x128xf32>
    %17 = arith.addf %13, %16 : vector<8x128xf32>
    %cst_14 = arith.constant 0.000000e+00 : f32
    %18 = vector.broadcast %cst_14 : f32 to vector<8x128xf32>
    %19 = arith.maximumf %17, %18 : vector<8x128xf32>
    %c1 = arith.constant 1 : index
    %c0_15 = arith.constant 0 : index
    %c0_16 = arith.constant 0 : index
    %20 = vector.load %arg8[%c1, %c0_15, %c0_16] : memref<3x128x128xf32, #tpu.memory_space<vmem>>, vector<1x128x128xf32>
    %21 = vector.shape_cast %20 : vector<1x128x128xf32> to vector<128x128xf32>
    %cst_17 = arith.constant dense<0.000000e+00> : vector<8x128xf32>
    %22 = tpu.matmul %19, %21, %cst_17 {dimension_numbers = #tpu.dot_dimension_numbers<[1], [0], [0], [1], [0, 0, 1, 1], [], []>} : vector<8x128xf32>, vector<128x128xf32>, vector<8x128xf32> -> vector<8x128xf32>
    %c1_18 = arith.constant 1 : index
    %c0_19 = arith.constant 0 : index
    %c0_20 = arith.constant 0 : index
    %23 = vector.load %arg6[%c1_18, %c0_19, %c0_20] : memref<3x1x128xf32, #tpu.memory_space<vmem>>, vector<1x1x128xf32>
    %24 = vector.shape_cast %23 : vector<1x1x128xf32> to vector<1x128xf32>
    %25 = vector.broadcast %24 : vector<1x128xf32> to vector<8x128xf32>
    %26 = arith.addf %22, %25 : vector<8x128xf32>
    %cst_21 = arith.constant 0.000000e+00 : f32
    %27 = vector.broadcast %cst_21 : f32 to vector<8x128xf32>
    %28 = arith.maximumf %26, %27 : vector<8x128xf32>
    %c2 = arith.constant 2 : index
    %c0_22 = arith.constant 0 : index
    %c0_23 = arith.constant 0 : index
    %29 = vector.load %arg8[%c2, %c0_22, %c0_23] : memref<3x128x128xf32, #tpu.memory_space<vmem>>, vector<1x128x128xf32>
    %30 = vector.shape_cast %29 : vector<1x128x128xf32> to vector<128x128xf32>
    %cst_24 = arith.constant dense<0.000000e+00> : vector<8x128xf32>
    %31 = tpu.matmul %28, %30, %cst_24 {dimension_numbers = #tpu.dot_dimension_numbers<[1], [0], [0], [1], [0, 0, 1, 1], [], []>} : vector<8x128xf32>, vector<128x128xf32>, vector<8x128xf32> -> vector<8x128xf32>
    %c2_25 = arith.constant 2 : index
    %c0_26 = arith.constant 0 : index
    %c0_27 = arith.constant 0 : index
    %32 = vector.load %arg6[%c2_25, %c0_26, %c0_27] : memref<3x1x128xf32, #tpu.memory_space<vmem>>, vector<1x1x128xf32>
    %33 = vector.shape_cast %32 : vector<1x1x128xf32> to vector<1x128xf32>
    %34 = vector.broadcast %33 : vector<1x128xf32> to vector<8x128xf32>
    %35 = arith.addf %31, %34 : vector<8x128xf32>
    %cst_28 = arith.constant 0.000000e+00 : f32
    %36 = vector.broadcast %cst_28 : f32 to vector<8x128xf32>
    %37 = arith.maximumf %35, %36 : vector<8x128xf32>
    %c0_29 = arith.constant 0 : index
    %c0_30 = arith.constant 0 : index
    %38 = vector.load %arg7[%c0_29, %c0_30] : memref<8x128xf32, #tpu.memory_space<vmem>>, vector<8x128xf32>
    tpu.vector_store %arg7[%c0_29, %c0_30], %37 {strides = array<i32>} : memref<8x128xf32, #tpu.memory_space<vmem>>, vector<8x128xf32>,
    return
  }
  func.func @transform_0(%arg0: i32, %arg1: i32) -> (i32, i32) {
    %c1_i32 = arith.constant 1 : i32
    %0 = arith.muli %arg0, %c1_i32 : i32
    %1 = arith.addi %0, %arg1 : i32
    %c0_i32 = arith.constant 0 : i32
    %c0_i32_0 = arith.constant 0 : i32
    return %1, %c0_i32 : i32, i32
  }
  func.func @transform_1(%arg0: i32, %arg1: i32) -> (i32, i32) {
    %c0_i32 = arith.constant 0 : i32
    %c0_i32_0 = arith.constant 0 : i32
    %c0_i32_1 = arith.constant 0 : i32
    return %c0_i32, %c0_i32_0 : i32, i32
  }
  func.func @transform_2(%arg0: i32, %arg1: i32) -> (i32, i32) {
    %c0_i32 = arith.constant 0 : i32
    %c0_i32_0 = arith.constant 0 : i32
    %c0_i32_1 = arith.constant 0 : i32
    return %c0_i32, %c0_i32_0 : i32, i32
  }
  func.func @transform_4(%arg0: i32, %arg1: i32) -> (i32, i32, i32) {
    %c0_i32 = arith.constant 0 : i32
    %c0_i32_0 = arith.constant 0 : i32
    %c0_i32_1 = arith.constant 0 : i32
    %c0_i32_2 = arith.constant 0 : i32
    return %c0_i32, %c0_i32_0, %c0_i32_1 : i32, i32, i32
  }
  func.func @transform_5(%arg0: i32, %arg1: i32) -> (i32, i32) {
    %c1_i32 = arith.constant 1 : i32
    %0 = arith.muli %arg0, %c1_i32 : i32
    %1 = arith.addi %0, %arg1 : i32
    %c0_i32 = arith.constant 0 : i32
    %c0_i32_0 = arith.constant 0 : i32
    return %1, %c0_i32 : i32, i32
  }
}

</mosaic_0001>

<llo_original>
// kernel: decoder_forward.1
$region0: #{decoder_forward.1}
  #allocation0 [shape = 'u32[]', space=smem, size = 0x4, offset = 0x4, fixed_abs, tag = 'smem constant byte address 0x4 - core index']
  #allocation1 [shape = 'u32[144,128]{1,0:T(1,128)}', space=vmem, size = 0x12000, scoped, tag = 'internal scratch']
  #allocation2 [shape = 'f32[3,128,128]{2,1,0:T(8,128)}', space=vmem, size = 0x30000, scoped, tag = 'scratch operand']
  #allocation3 [shape = 's32[1]{0}', space=sflag, size = 0x4, scoped, tag = 'scratch operand']
  #allocation10 [shape = 's32[]', space=sflag, size = 0x4, offset = 0, fixed_abs, tag = 'sflag constant byte address 0x0 - dummy sync flag']
  #allocation11 [shape = 's32[]', space=sflag, size = 0x4, offset = 0, fixed_abs, tag = 'sflag constant byte address 0x0 - dummy sync flag']
  #allocation12 [shape = 'u32[]', space=smem, size = 0x4, offset = 0x44, fixed_abs, tag = 'smem constant byte address 0x44 - assertion arg 0']
  #allocation13 [shape = 'u32[]', space=smem, size = 0x4, offset = 0x48, fixed_abs, tag = 'smem constant byte address 0x48 - assertion arg 1']
  %s0 = inlined_call_operand.hbm [shape: f32[8,16], index: 0, kind: input, shape index: {}]
  %s1 = inlined_call_operand.hbm [shape: f32[16,128], index: 1, kind: input, shape index: {}]
  %s2 = inlined_call_operand.vmem [shape: f32[1,128], index: 2, kind: input, shape index: {}]
  %s3 = inlined_call_operand.hbm [shape: f32[3,128,128], index: 3, kind: input, shape index: {}]
  %s4 = inlined_call_operand.vmem [shape: f32[3,1,128], index: 4, kind: input, shape index: {}]
  %s5 = inlined_call_operand.hbm [shape: f32[8,128], index: 5, kind: output, shape index: {}]
  %s6 = sld [smem:[#allocation0]]
  $region42: #{decoder_forward.1} parent=0
    _
  %s8 = ssub.s32 1, %s6
  %s9 = scalar_select 0, %s8, %s6
  $region1: #{decoder_forward.1} parent=0
    #allocation4 [shape = 'u8[4096]{0}', space=vmem, size = 0x1000, scoped, tag = 'input window, operand 0, single buffered']
    #allocation5 [shape = 's32[1]{0}', space=sflag, size = 0x4, scoped, tag = 'scoped memory for decoder_forward.1']
    #allocation6 [shape = 's32[1]{0}', space=sflag, size = 0x4, scoped, tag = 'scoped memory for decoder_forward.1']
    #allocation7 [shape = 'u8[8192]{0}', space=vmem, size = 0x2000, scoped, tag = 'input window, operand 1, single buffered']
    #allocation8 [shape = 's32[1]{0}', space=sflag, size = 0x4, scoped, tag = 'scoped memory for decoder_forward.1']
    #allocation9 [shape = 'u8[4096]{0}', space=vmem, size = 0x1000, scoped, tag = 'output window, operand 0, single buffered']
    %10 = vsyncpa [#allocation5], 0
    %11 = vsyncpa [#allocation8], 0
    %12 = vsyncpa [#allocation6], 0
    // Predicated region
    $region2: #{decoder_forward.1} parent=1 // pred_check
      _
    $region3: #{decoder_forward.1} parent=1 // pred_check_branch
      %14 = sbr.rel (0) target = $region5
    $region4: #{decoder_forward.1} parent=1 // pred_region
      %s15 = sadd.s32 0, 0
      %s17 = ssub.s32 128, 128
      %18 = vsyncadd [#allocation5], %s17
      %s19 = smul.addr %s15, 128
      %s20 = scalar_lea.hbm %s0, %s19
      %s22 = sshll.u32 [#allocation4], 4
      %s23 = int_to_ptr.vmem [resolvable:$true] %s22
      %25 = dma.hbm_to_vmem [thread:$0]  %s20, 128, %s23, [#allocation5]
    $region5: #{decoder_forward.1} parent=1 // pred_fallthru
      _
    // Predicated region
    $region6: #{decoder_forward.1} parent=1 // pred_check
      _
    $region7: #{decoder_forward.1} parent=1 // pred_check_branch
      %27 = sbr.rel (0) target = $region9
    $region8: #{decoder_forward.1} parent=1 // pred_region
      %s29 = ssub.s32 256, 256
      %30 = vsyncadd [#allocation8], %s29
      %s31 = sshll.u32 [#allocation7], 4
      %s32 = int_to_ptr.vmem [resolvable:$true] %s31
      %37 = dma.hbm_to_vmem [thread:$0]  %s1, 256, %s32, [#allocation8], 128, 128, 8
    $region9: #{decoder_forward.1} parent=1 // pred_fallthru
      _
    // Predicated region
    $region10: #{decoder_forward.1} parent=1 // pred_check
      _
    $region11: #{decoder_forward.1} parent=1 // pred_check_branch
      %39 = sbr.rel (0) target = $region13
    $region12: #{decoder_forward.1} parent=1 // pred_region
      _
    $region13: #{decoder_forward.1} parent=1 // pred_fallthru
      _
    // Predicated region
    $region14: #{decoder_forward.1} parent=1 // pred_check
      _
    $region15: #{decoder_forward.1} parent=1 // pred_check_branch
      %41 = sbr.rel (0) target = $region17
    $region16: #{decoder_forward.1} parent=1 // pred_region
      _
    $region17: #{decoder_forward.1} parent=1 // pred_fallthru
      _
    // Predicated region
    $region18: #{decoder_forward.1} parent=1 // pred_check
      _
    $region19: #{decoder_forward.1} parent=1 // pred_check_branch
      %43 = sbr.rel (0) target = $region21
    $region20: #{decoder_forward.1} parent=1 // pred_region
      %44 = dma.done [#allocation5], 128
    $region21: #{decoder_forward.1} parent=1 // pred_fallthru
      _
    // Predicated region
    $region22: #{decoder_forward.1} parent=1 // pred_check
      _
    $region23: #{decoder_forward.1} parent=1 // pred_check_branch
      %46 = sbr.rel (0) target = $region25
    $region24: #{decoder_forward.1} parent=1 // pred_region
      %47 = dma.done [#allocation8], 256
    $region25: #{decoder_forward.1} parent=1 // pred_fallthru
      _
    %s48 = sadd.s32 0, 0
    %s49 = sadd.s32 0, 0
    %p50 = scmp.eq.s32.totalorder 0, 0
    // Predicated region
    $region26: #{decoder_forward.1} parent=1 // pred_check
      %p51 = pneg %p50
    $region27: #{decoder_forward.1} parent=1 // pred_check_branch
      %53 = sbr.rel (%p51) target = $region29
    $region28: #{decoder_forward.1} parent=1 // pred_region
      // Predicated region
      $region30: #{decoder_forward.1} parent=28 // pred_check
        _
      $region31: #{decoder_forward.1} parent=28 // pred_check_branch
        %55 = sbr.rel target = $region33
      $region32: #{decoder_forward.1} parent=28 // pred_region
        %56 = sst [smem:[#allocation12]] [#allocation11]
        %57 = sst [smem:[#allocation13]] [#allocation10]
      $region33: #{decoder_forward.1} parent=28 // pred_fallthru
        _
      %59 = shalt.err (0)
      %s61 = sshll.u32 [#allocation2], 4
      %s62 = int_to_ptr.vmem [resolvable:$true] %s61
      %64 = dma.hbm_to_vmem [thread:$0]  %s3, 6144, %s62, [#allocation3]
      %s65 = smul.u32 3, 128
      %s66 = smul.u32 %s65, 1
      %s67 = sshll.u32 %s66, 4
      %68 = dma.done [#allocation3], %s67
    $region29: #{decoder_forward.1} parent=1 // pred_fallthru
      _
    %v69 = vld [vmem:[#allocation4] sm:$0xff]
    %v70 = vld [vmem:[#allocation7] sm:$0xff]
    %v71 = vld [vmem:[#allocation7 + $0x8] sm:$0xff]
    %v72 = vld [vmem:[%s2] sm:$0x1]
    %v74 = vlaneseq
    %v75 = vshrl.u32 %v74, 7
    %v76 = vsub.s32 0, %v75
    %v77 = vrot.slane %v72, %v76
    %vm79 = vcmask 130048
    %v81 = vsel %vm79, %v69, 0
    %83 = vmatprep.subr.mxu0 0.0
    %84 = vmatpush1.msra.mxu0 %v70
    %85 = vmatprep.subr.mxu0 0.0
    %86 = vmatpush1.msra.mxu0 %v71
    %87 = vmatprep.subr.mxu0 0.0
    %88 = vmatpush1.msra.mxu0 0.0
    %89 = vmatprep.subr.mxu0 0.0
    %90 = vmatpush1.msra.mxu0 0.0
    %91 = vmatprep.subr.mxu0 0.0
    %92 = vmatpush1.msra.mxu0 0.0
    %93 = vmatprep.subr.mxu0 0.0
    %94 = vmatpush1.msra.mxu0 0.0
    %95 = vmatprep.subr.mxu0 0.0
    %96 = vmatpush1.msra.mxu0 0.0
    %97 = vmatprep.subr.mxu0 0.0
    %98 = vmatpush1.msra.mxu0 0.0
    %99 = vmatprep.subr.mxu0 0.0
    %100 = vmatpush1.msra.mxu0 0.0
    %101 = vmatprep.subr.mxu0 0.0
    %102 = vmatpush1.msra.mxu0 0.0
    %103 = vmatprep.subr.mxu0 0.0
    %104 = vmatpush1.msra.mxu0 0.0
    %105 = vmatprep.subr.mxu0 0.0
    %106 = vmatpush1.msra.mxu0 0.0
    %107 = vmatprep.subr.mxu0 0.0
    %108 = vmatpush1.msra.mxu0 0.0
    %109 = vmatprep.subr.mxu0 0.0
    %110 = vmatpush1.msra.mxu0 0.0
    %111 = vmatprep.subr.mxu0 0.0
    %112 = vmatpush1.msra.mxu0 0.0
    %113 = vmatprep.subr.mxu0 0.0
    %114 = vmatpush1.msra.mxu0 0.0
    %115 = vmatprep.subr.mxu0 0.0
    %116 = vmatpush1.msra.mxu0 0.0
    %117 = vmatprep.subr.mxu0 0.0
    %118 = vmatpush1.msra.mxu0 0.0
    %119 = vmatprep.subr.mxu0 0.0
    %120 = vmatpush1.msra.mxu0 0.0
    %121 = vmatprep.subr.mxu0 0.0
    %122 = vmatpush1.msra.mxu0 0.0
    %123 = vmatprep.subr.mxu0 0.0
    %124 = vmatpush1.msra.mxu0 0.0
    %125 = vmatprep.subr.mxu0 0.0
    %126 = vmatpush1.msra.mxu0 0.0
    %127 = vmatprep.subr.mxu0 0.0
    %128 = vmatpush1.msra.mxu0 0.0
    %129 = vmatprep.subr.mxu0 0.0
    %130 = vmatpush1.msra.mxu0 0.0
    %131 = vmatprep.subr.mxu0 0.0
    %132 = vmatpush1.msra.mxu0 0.0
    %133 = vmatprep.subr.mxu0 0.0
    %134 = vmatpush1.msra.mxu0 0.0
    %135 = vmatprep.subr.mxu0 0.0
    %136 = vmatpush1.msra.mxu0 0.0
    %137 = vmatprep.subr.mxu0 0.0
    %138 = vmatpush1.msra.mxu0 0.0
    %139 = vmatprep.subr.mxu0 0.0
    %140 = vmatpush1.msra.mxu0 0.0
    %141 = vmatprep.subr.mxu0 0.0
    %142 = vmatpush1.msra.mxu0 0.0
    %143 = vmatprep.subr.mxu0 0.0
    %144 = vmatpush1.msra.mxu0 0.0
    %145 = vmatprep.subr.mxu0 0.0
    %146 = vmatpush1.msra.mxu0 0.0
    %147 = vmatprep.mubr.f32.mxu0 0.0
    %148 = vmatmul.mubr.f32.gmra.mrb[0].mxu0 %v81
    %v149 = vpop.f32.mrb[0].mxu0
    %v150 = vadd.f32 %v77, %v149
    %v151 = vpop.f32.mrb[0].mxu0
    %152 = vdwg.mxu0
    %v153 = vmax.f32 %v150, 0.0
    %v154 = vld [vmem:[#allocation2] sm:$0xff]
    %v155 = vld [vmem:[#allocation2 + $0x8] sm:$0xff]
    %v156 = vld [vmem:[#allocation2 + $0x10] sm:$0xff]
    %v157 = vld [vmem:[#allocation2 + $0x18] sm:$0xff]
    %v158 = vld [vmem:[#allocation2 + $0x20] sm:$0xff]
    %v159 = vld [vmem:[#allocation2 + $0x28] sm:$0xff]
    %v160 = vld [vmem:[#allocation2 + $0x30] sm:$0xff]
    %v161 = vld [vmem:[#allocation2 + $0x38] sm:$0xff]
    %v162 = vld [vmem:[#allocation2 + $0x40] sm:$0xff]
    %v163 = vld [vmem:[#allocation2 + $0x48] sm:$0xff]
    %v164 = vld [vmem:[#allocation2 + $0x50] sm:$0xff]
    %v165 = vld [vmem:[#allocation2 + $0x58] sm:$0xff]
    %v166 = vld [vmem:[#allocation2 + $0x60] sm:$0xff]
    %v167 = vld [vmem:[#allocation2 + $0x68] sm:$0xff]
    %v168 = vld [vmem:[#allocation2 + $0x70] sm:$0xff]
    %v169 = vld [vmem:[#allocation2 + $0x78] sm:$0xff]
    %v170 = vld [vmem:[%s4] sm:$0x1]
    %v172 = vlaneseq
    %v173 = vshrl.u32 %v172, 7
    %v174 = vsub.s32 0, %v173
    %v175 = vrot.slane %v170, %v174
    %177 = vmatprep.subr.mxu0 0.0
    %178 = vmatpush1.msra.mxu0 %v154
    %179 = vmatprep.subr.mxu0 0.0
    %180 = vmatpush1.msra.mxu0 %v155
    %181 = vmatprep.subr.mxu0 0.0
    %182 = vmatpush1.msra.mxu0 %v156
    %183 = vmatprep.subr.mxu0 0.0
    %184 = vmatpush1.msra.mxu0 %v157
    %185 = vmatprep.subr.mxu0 0.0
    %186 = vmatpush1.msra.mxu0 %v158
    %187 = vmatprep.subr.mxu0 0.0
    %188 = vmatpush1.msra.mxu0 %v159
    %189 = vmatprep.subr.mxu0 0.0
    %190 = vmatpush1.msra.mxu0 %v160
    %191 = vmatprep.subr.mxu0 0.0
    %192 = vmatpush1.msra.mxu0 %v161
    %193 = vmatprep.subr.mxu0 0.0
    %194 = vmatpush1.msra.mxu0 %v162
    %195 = vmatprep.subr.mxu0 0.0
    %196 = vmatpush1.msra.mxu0 %v163
    %197 = vmatprep.subr.mxu0 0.0
    %198 = vmatpush1.msra.mxu0 %v164
    %199 = vmatprep.subr.mxu0 0.0
    %200 = vmatpush1.msra.mxu0 %v165
    %201 = vmatprep.subr.mxu0 0.0
    %202 = vmatpush1.msra.mxu0 %v166
    %203 = vmatprep.subr.mxu0 0.0
    %204 = vmatpush1.msra.mxu0 %v167
    %205 = vmatprep.subr.mxu0 0.0
    %206 = vmatpush1.msra.mxu0 %v168
    %207 = vmatprep.subr.mxu0 0.0
    %208 = vmatpush1.msra.mxu0 %v169
    %209 = vmatprep.subr.mxu0 0.0
    %210 = vmatpush1.msra.mxu0 0.0
    %211 = vmatprep.subr.mxu0 0.0
    %212 = vmatpush1.msra.mxu0 0.0
    %213 = vmatprep.subr.mxu0 0.0
    %214 = vmatpush1.msra.mxu0 0.0
    %215 = vmatprep.subr.mxu0 0.0
    %216 = vmatpush1.msra.mxu0 0.0
    %217 = vmatprep.subr.mxu0 0.0
    %218 = vmatpush1.msra.mxu0 0.0
    %219 = vmatprep.subr.mxu0 0.0
    %220 = vmatpush1.msra.mxu0 0.0
    %221 = vmatprep.subr.mxu0 0.0
    %222 = vmatpush1.msra.mxu0 0.0
    %223 = vmatprep.subr.mxu0 0.0
    %224 = vmatpush1.msra.mxu0 0.0
    %225 = vmatprep.subr.mxu0 0.0
    %226 = vmatpush1.msra.mxu0 0.0
    %227 = vmatprep.subr.mxu0 0.0
    %228 = vmatpush1.msra.mxu0 0.0
    %229 = vmatprep.subr.mxu0 0.0
    %230 = vmatpush1.msra.mxu0 0.0
    %231 = vmatprep.subr.mxu0 0.0
    %232 = vmatpush1.msra.mxu0 0.0
    %233 = vmatprep.subr.mxu0 0.0
    %234 = vmatpush1.msra.mxu0 0.0
    %235 = vmatprep.subr.mxu0 0.0
    %236 = vmatpush1.msra.mxu0 0.0
    %237 = vmatprep.subr.mxu0 0.0
    %238 = vmatpush1.msra.mxu0 0.0
    %239 = vmatprep.subr.mxu0 0.0
    %240 = vmatpush1.msra.mxu0 0.0
    %241 = vmatprep.mubr.f32.mxu0 0.0
    %242 = vmatmul.mubr.f32.gmra.mrb[0].mxu0 %v153
    %v243 = vpop.f32.mrb[0].mxu0
    %v244 = vadd.f32 %v175, %v243
    %v245 = vpop.f32.mrb[0].mxu0
    %246 = vdwg.mxu0
    %v247 = vmax.f32 %v244, 0.0
    %s248 = scalar_lea.vmem [#allocation2], 128
    %v249 = vld [vmem:[%s248] sm:$0xff]
    %v250 = vld [vmem:[%s248 + $0x8] sm:$0xff]
    %v251 = vld [vmem:[%s248 + $0x10] sm:$0xff]
    %v252 = vld [vmem:[%s248 + $0x18] sm:$0xff]
    %v253 = vld [vmem:[%s248 + $0x20] sm:$0xff]
    %v254 = vld [vmem:[%s248 + $0x28] sm:$0xff]
    %v255 = vld [vmem:[%s248 + $0x30] sm:$0xff]
    %v256 = vld [vmem:[%s248 + $0x38] sm:$0xff]
    %v257 = vld [vmem:[%s248 + $0x40] sm:$0xff]
    %v258 = vld [vmem:[%s248 + $0x48] sm:$0xff]
    %v259 = vld [vmem:[%s248 + $0x50] sm:$0xff]
    %v260 = vld [vmem:[%s248 + $0x58] sm:$0xff]
    %v261 = vld [vmem:[%s248 + $0x60] sm:$0xff]
    %v262 = vld [vmem:[%s248 + $0x68] sm:$0xff]
    %v263 = vld [vmem:[%s248 + $0x70] sm:$0xff]
    %v264 = vld [vmem:[%s248 + $0x78] sm:$0xff]
    %s265 = scalar_lea.vmem %s4, 1
    %v266 = vld [vmem:[%s265] sm:$0x1]
    %v268 = vlaneseq
    %v269 = vshrl.u32 %v268, 7
    %v270 = vsub.s32 0, %v269
    %v271 = vrot.slane %v266, %v270
    %273 = vmatprep.subr.mxu0 0.0
    %274 = vmatpush1.msra.mxu0 %v249
    %275 = vmatprep.subr.mxu0 0.0
    %276 = vmatpush1.msra.mxu0 %v250
    %277 = vmatprep.subr.mxu0 0.0
    %278 = vmatpush1.msra.mxu0 %v251
    %279 = vmatprep.subr.mxu0 0.0
    %280 = vmatpush1.msra.mxu0 %v252
    %281 = vmatprep.subr.mxu0 0.0
    %282 = vmatpush1.msra.mxu0 %v253
    %283 = vmatprep.subr.mxu0 0.0
    %284 = vmatpush1.msra.mxu0 %v254
    %285 = vmatprep.subr.mxu0 0.0
    %286 = vmatpush1.msra.mxu0 %v255
    %287 = vmatprep.subr.mxu0 0.0
    %288 = vmatpush1.msra.mxu0 %v256
    %289 = vmatprep.subr.mxu0 0.0
    %290 = vmatpush1.msra.mxu0 %v257
    %291 = vmatprep.subr.mxu0 0.0
    %292 = vmatpush1.msra.mxu0 %v258
    %293 = vmatprep.subr.mxu0 0.0
    %294 = vmatpush1.msra.mxu0 %v259
    %295 = vmatprep.subr.mxu0 0.0
    %296 = vmatpush1.msra.mxu0 %v260
    %297 = vmatprep.subr.mxu0 0.0
    %298 = vmatpush1.msra.mxu0 %v261
    %299 = vmatprep.subr.mxu0 0.0
    %300 = vmatpush1.msra.mxu0 %v262
    %301 = vmatprep.subr.mxu0 0.0
    %302 = vmatpush1.msra.mxu0 %v263
    %303 = vmatprep.subr.mxu0 0.0
    %304 = vmatpush1.msra.mxu0 %v264
    %305 = vmatprep.subr.mxu0 0.0
    %306 = vmatpush1.msra.mxu0 0.0
    %307 = vmatprep.subr.mxu0 0.0
    %308 = vmatpush1.msra.mxu0 0.0
    %309 = vmatprep.subr.mxu0 0.0
    %310 = vmatpush1.msra.mxu0 0.0
    %311 = vmatprep.subr.mxu0 0.0
    %312 = vmatpush1.msra.mxu0 0.0
    %313 = vmatprep.subr.mxu0 0.0
    %314 = vmatpush1.msra.mxu0 0.0
    %315 = vmatprep.subr.mxu0 0.0
    %316 = vmatpush1.msra.mxu0 0.0
    %317 = vmatprep.subr.mxu0 0.0
    %318 = vmatpush1.msra.mxu0 0.0
    %319 = vmatprep.subr.mxu0 0.0
    %320 = vmatpush1.msra.mxu0 0.0
    %321 = vmatprep.subr.mxu0 0.0
    %322 = vmatpush1.msra.mxu0 0.0
    %323 = vmatprep.subr.mxu0 0.0
    %324 = vmatpush1.msra.mxu0 0.0
    %325 = vmatprep.subr.mxu0 0.0
    %326 = vmatpush1.msra.mxu0 0.0
    %327 = vmatprep.subr.mxu0 0.0
    %328 = vmatpush1.msra.mxu0 0.0
    %329 = vmatprep.subr.mxu0 0.0
    %330 = vmatpush1.msra.mxu0 0.0
    %331 = vmatprep.subr.mxu0 0.0
    %332 = vmatpush1.msra.mxu0 0.0
    %333 = vmatprep.subr.mxu0 0.0
    %334 = vmatpush1.msra.mxu0 0.0
    %335 = vmatprep.subr.mxu0 0.0
    %336 = vmatpush1.msra.mxu0 0.0
    %337 = vmatprep.mubr.f32.mxu0 0.0
    %338 = vmatmul.mubr.f32.gmra.mrb[0].mxu0 %v247
    %v339 = vpop.f32.mrb[0].mxu0
    %v340 = vadd.f32 %v271, %v339
    %v341 = vpop.f32.mrb[0].mxu0
    %342 = vdwg.mxu0
    %v343 = vmax.f32 %v340, 0.0
    %s344 = scalar_lea.vmem [#allocation2], 256
    %v345 = vld [vmem:[%s344] sm:$0xff]
    %v346 = vld [vmem:[%s344 + $0x8] sm:$0xff]
    %v347 = vld [vmem:[%s344 + $0x10] sm:$0xff]
    %v348 = vld [vmem:[%s344 + $0x18] sm:$0xff]
    %v349 = vld [vmem:[%s344 + $0x20] sm:$0xff]
    %v350 = vld [vmem:[%s344 + $0x28] sm:$0xff]
    %v351 = vld [vmem:[%s344 + $0x30] sm:$0xff]
    %v352 = vld [vmem:[%s344 + $0x38] sm:$0xff]
    %v353 = vld [vmem:[%s344 + $0x40] sm:$0xff]
    %v354 = vld [vmem:[%s344 + $0x48] sm:$0xff]
    %v355 = vld [vmem:[%s344 + $0x50] sm:$0xff]
    %v356 = vld [vmem:[%s344 + $0x58] sm:$0xff]
    %v357 = vld [vmem:[%s344 + $0x60] sm:$0xff]
    %v358 = vld [vmem:[%s344 + $0x68] sm:$0xff]
    %v359 = vld [vmem:[%s344 + $0x70] sm:$0xff]
    %v360 = vld [vmem:[%s344 + $0x78] sm:$0xff]
    %s361 = scalar_lea.vmem %s4, 2
    %v362 = vld [vmem:[%s361] sm:$0x1]
    %v364 = vlaneseq
    %v365 = vshrl.u32 %v364, 7
    %v366 = vsub.s32 0, %v365
    %v367 = vrot.slane %v362, %v366
    %369 = vmatprep.subr.mxu0 0.0
    %370 = vmatpush1.msra.mxu0 %v345
    %371 = vmatprep.subr.mxu0 0.0
    %372 = vmatpush1.msra.mxu0 %v346
    %373 = vmatprep.subr.mxu0 0.0
    %374 = vmatpush1.msra.mxu0 %v347
    %375 = vmatprep.subr.mxu0 0.0
    %376 = vmatpush1.msra.mxu0 %v348
    %377 = vmatprep.subr.mxu0 0.0
    %378 = vmatpush1.msra.mxu0 %v349
    %379 = vmatprep.subr.mxu0 0.0
    %380 = vmatpush1.msra.mxu0 %v350
    %381 = vmatprep.subr.mxu0 0.0
    %382 = vmatpush1.msra.mxu0 %v351
    %383 = vmatprep.subr.mxu0 0.0
    %384 = vmatpush1.msra.mxu0 %v352
    %385 = vmatprep.subr.mxu0 0.0
    %386 = vmatpush1.msra.mxu0 %v353
    %387 = vmatprep.subr.mxu0 0.0
    %388 = vmatpush1.msra.mxu0 %v354
    %389 = vmatprep.subr.mxu0 0.0
    %390 = vmatpush1.msra.mxu0 %v355
    %391 = vmatprep.subr.mxu0 0.0
    %392 = vmatpush1.msra.mxu0 %v356
    %393 = vmatprep.subr.mxu0 0.0
    %394 = vmatpush1.msra.mxu0 %v357
    %395 = vmatprep.subr.mxu0 0.0
    %396 = vmatpush1.msra.mxu0 %v358
    %397 = vmatprep.subr.mxu0 0.0
    %398 = vmatpush1.msra.mxu0 %v359
    %399 = vmatprep.subr.mxu0 0.0
    %400 = vmatpush1.msra.mxu0 %v360
    %401 = vmatprep.subr.mxu0 0.0
    %402 = vmatpush1.msra.mxu0 0.0
    %403 = vmatprep.subr.mxu0 0.0
    %404 = vmatpush1.msra.mxu0 0.0
    %405 = vmatprep.subr.mxu0 0.0
    %406 = vmatpush1.msra.mxu0 0.0
    %407 = vmatprep.subr.mxu0 0.0
    %408 = vmatpush1.msra.mxu0 0.0
    %409 = vmatprep.subr.mxu0 0.0
    %410 = vmatpush1.msra.mxu0 0.0
    %411 = vmatprep.subr.mxu0 0.0
    %412 = vmatpush1.msra.mxu0 0.0
    %413 = vmatprep.subr.mxu0 0.0
    %414 = vmatpush1.msra.mxu0 0.0
    %415 = vmatprep.subr.mxu0 0.0
    %416 = vmatpush1.msra.mxu0 0.0
    %417 = vmatprep.subr.mxu0 0.0
    %418 = vmatpush1.msra.mxu0 0.0
    %419 = vmatprep.subr.mxu0 0.0
    %420 = vmatpush1.msra.mxu0 0.0
    %421 = vmatprep.subr.mxu0 0.0
    %422 = vmatpush1.msra.mxu0 0.0
    %423 = vmatprep.subr.mxu0 0.0
    %424 = vmatpush1.msra.mxu0 0.0
    %425 = vmatprep.subr.mxu0 0.0
    %426 = vmatpush1.msra.mxu0 0.0
    %427 = vmatprep.subr.mxu0 0.0
    %428 = vmatpush1.msra.mxu0 0.0
    %429 = vmatprep.subr.mxu0 0.0
    %430 = vmatpush1.msra.mxu0 0.0
    %431 = vmatprep.subr.mxu0 0.0
    %432 = vmatpush1.msra.mxu0 0.0
    %433 = vmatprep.mubr.f32.mxu0 0.0
    %434 = vmatmul.mubr.f32.gmra.mrb[0].mxu0 %v343
    %v435 = vpop.f32.mrb[0].mxu0
    %v436 = vadd.f32 %v367, %v435
    %v437 = vpop.f32.mrb[0].mxu0
    %438 = vdwg.mxu0
    %v439 = vmax.f32 %v436, 0.0
    %440 = vst [vmem:[#allocation9] sm:$0xff] %v439
    // Predicated region
    $region34: #{decoder_forward.1} parent=1 // pred_check
      _
    $region35: #{decoder_forward.1} parent=1 // pred_check_branch
      %442 = sbr.rel (0) target = $region37
    $region36: #{decoder_forward.1} parent=1 // pred_region
      %s443 = sadd.s32 0, 0
      %s445 = ssub.s32 128, 128
      %446 = vsyncadd [#allocation6], %s445
      %s447 = smul.addr %s443, 128
      %s448 = scalar_lea.hbm %s5, %s447
      %s450 = sshll.u32 [#allocation9], 4
      %s451 = int_to_ptr.vmem [resolvable:$true] %s450
      %453 = dma.vmem_to_hbm [thread:$0]  %s451, 128, %s448, [#allocation6]
    $region37: #{decoder_forward.1} parent=1 // pred_fallthru
      _
    // Predicated region
    $region38: #{decoder_forward.1} parent=1 // pred_check
      _
    $region39: #{decoder_forward.1} parent=1 // pred_check_branch
      %455 = sbr.rel (0) target = $region41
    $region40: #{decoder_forward.1} parent=1 // pred_region
      %456 = dma.done [#allocation6], 128
    $region41: #{decoder_forward.1} parent=1 // pred_fallthru
      _
    %457 = vsyncpa [#allocation5], 1
    %458 = vsyncpa [#allocation8], 1
    %459 = vsyncpa [#allocation6], 1
  %460 = vsyncmov [#allocation3]
  %s461 = vpop.sfrf %460
  %p462 = scmp.eq.s32.totalorder %s461, 0
  %p463 = pneg %p462
  %465 = shalt.err (%p463)

</llo_original>
